<compile_context>
chip_gen: v6e
topology: v6e:2x2x1
jax: 0.10.0
libtpu: 0.0.40
codegen_flags: <defaults>
</compile_context>

<pallas_src>
import functools
import numpy as np
import jax
import jax.numpy as jnp
from jax.experimental import pallas as pl
from jax.experimental.pallas import tpu as pltpu


# ----------------------------- parameter setup ------------------------------
def _to_mel(hz):
    return 2595 * np.log10(1 + hz / 700)


def _to_hz(mel):
    return 700 * (10 ** (mel / 2595) - 1)


def build_sinc_filters(out_channels, kernel_size, sample_rate=16000):
    """Deterministic filter bank, identical to SincConv.__init__ + forward build."""
    if kernel_size % 2 == 0:
        kernel_size += 1
    NFFT = 2048
    f = int(sample_rate / 2) * np.linspace(0, 1, int(NFFT / 2) + 1)
    fmel = _to_mel(f)
    filbandwidthsmel = np.linspace(fmel.min(), fmel.max(), out_channels + 1)
    mel = _to_hz(filbandwidthsmel)
    hsupp = np.arange(-(kernel_size - 1) / 2, (kernel_size - 1) / 2 + 1)
    ham = np.hamming(kernel_size)
    band_pass = np.zeros((out_channels, kernel_size))
    for i in range(out_channels):
        fmin, fmax = mel[i], mel[i + 1]
        h_high = 2 * fmax / sample_rate * np.sinc(2 * fmax * hsupp / sample_rate)
        h_low = 2 * fmin / sample_rate * np.sinc(2 * fmin * hsupp / sample_rate)
        band_pass[i, :] = ham * (h_high - h_low)
    return jnp.asarray(band_pass, dtype=jnp.float32), kernel_size


# --------------------------------- kernel -----------------------------------
_UNROLL_Q = 16   # <= this many tap phases: stack the phases + single MXU dot


def _sinc_conv_kernel(x_ref, h_ref, w_ref, o_ref, xs_ref, *,
                      n_q, stride, t_tile, chunk, halo):
    # x_ref : (1, S, T)    main polyphase tile (time on the lane axis)
    # h_ref : (1, S, H)    halo = first H columns of time tile j+1
    # w_ref : (C, Q*S)     zero-padded filters, column k = q*S + r
    # o_ref : (1, C, T)    lane-dense output tile
    # xs_ref: (S, T + H)   VMEM staging of main + halo (contiguous, sliceable)
    n_ch = o_ref.shape[1]
    n_chunks = t_tile // chunk

    # Stage main + halo once, chunk by chunk (bounded vreg pressure), so every
    # phase slice below reads from one contiguous scratch buffer.
    for ci in range(n_chunks):
        a = ci * chunk
        xs_ref[:, a:a + chunk] = x_ref[0, :, a:a + chunk]
    xs_ref[:, t_tile:t_tile + halo] = h_ref[0]

    # Produce the (C, T) tile in lane chunks -> accumulator stays a few vregs.
    for ci in range(n_chunks):
        s0 = ci * chunk
        if n_q <= _UNROLL_Q:
            # Stack the Q shifted windows along the contraction axis and let a
            # single MXU dot do the phase accumulation (no per-phase f32 adds).
            g = jnp.concatenate(
                [xs_ref[:, s0 + q:s0 + q + chunk] for q in range(n_q)], axis=0)
            out = jnp.dot(w_ref[...], g, preferred_element_type=jnp.float32)
        else:
            # Large Q: per-phase dots into a small f32 accumulator.
            # TODO(synk): for very large Q (stride ~ 1, long kernels) move the
            # phase loop onto a grid reduction axis / fori_loop to bound
            # compile time and code size.
            out = jnp.zeros((n_ch, chunk), jnp.float32)
            for q in range(n_q):
                w_q = w_ref[:, q * stride:(q + 1) * stride]          # (C, S)
                x_q = xs_ref[:, s0 + q:s0 + q + chunk]               # (S, TC)
                out = out + jnp.dot(w_q, x_q,
                                    preferred_element_type=jnp.float32)
        o_ref[0, :, s0:s0 + chunk] = out.astype(o_ref.dtype)


# -------------------------------- wrapper ------------------------------------
def sinc_conv(x, filters, stride, *, time_tile=None, chunk=512,
              compute_dtype=None):
    """x: (B, 1, L) ; filters: (C, K) ; returns (B, C, L_out) like F.conv1d."""
    B, cin, L = x.shape
    assert cin == 1, "SincConv only supports one input channel"
    C, K = filters.shape
    assert L >= K, "input shorter than the kernel (L_out would be <= 0)"
    S = int(stride)
    L_out = (L - K) // S + 1
    Q = pl.cdiv(K, S)                               # taps per polyphase row
    cdt = x.dtype if compute_dtype is None else compute_dtype

    # Halo width: >= Q-1 and a multiple of 128 (one lane tile).
    H = 128 * pl.cdiv(max(Q - 1, 1), 128)

    # Time tile T: lane-dense, multiple of H (so the halo is a whole block).
    # Big default (8192) amortizes per-step overhead and the halo re-fetch;
    # VMEM stays far below limits even at 32k lanes.
    if time_tile is None:
        time_tile = 8192
    T = min(int(time_tile), 128 * pl.cdiv(L_out, 128))
    T = H * pl.cdiv(max(T, 128), H)
    n_t = pl.cdiv(L_out, T)
    # v7x megacore: make sure there are >= 2 parallel grid steps when possible.
    if B * n_t < 2 and L_out > H:
        T = H * pl.cdiv(pl.cdiv(L_out, 2), H)
        n_t = pl.cdiv(L_out, T)

    # Lane chunk for the in-kernel compute (vreg-pressure bound); must divide T.
    TC = next(c for c in (int(chunk), 512, 256, 128)
              if 128 <= c <= T and T % c == 0)

    # Polyphase fold (X[b, r, m] = x[b, m*S + r]); zero-pad so every main +
    # halo block is fully in bounds.  allow_input_fusion lets XLA fuse this
    # pad/reshape/transpose into the pallas operands where possible instead of
    # materializing an extra HBM round-trip of the input.
    n_cols = n_t * T + H
    xflat = jnp.pad(x[:, 0, :].astype(cdt), ((0, 0), (0, n_cols * S - L)))
    x_fold = jnp.transpose(xflat.reshape(B, n_cols, S), (0, 2, 1))  # (B, S, n_cols)

    # Zero-pad taps to Q*S; column index k = q*S + r matches the fold directly.
    K_pad = Q * S
    w_pad = jnp.pad(filters.astype(cdt), ((0, 0), (0, K_pad - K)))

    kernel = functools.partial(_sinc_conv_kernel, n_q=Q, stride=S,
                               t_tile=T, chunk=TC, halo=H)
    return pl.pallas_call(
        kernel,
        out_shape=jax.ShapeDtypeStruct((B, C, L_out), x.dtype),
        grid=(B, n_t),
        in_specs=[
            pl.BlockSpec((1, S, T), lambda b, j: (b, 0, j)),                   # main
            pl.BlockSpec((1, S, H), lambda b, j: (b, 0, (j + 1) * (T // H))),  # halo
            pl.BlockSpec((C, K_pad), lambda b, j: (0, 0)),                     # filters
        ],
        out_specs=pl.BlockSpec((1, C, T), lambda b, j: (b, 0, j)),
        scratch_shapes=[pltpu.VMEM((S, T + H), cdt)],
        compiler_params=pltpu.CompilerParams(
            dimension_semantics=("parallel", "parallel"),
            allow_input_fusion=[True, True, False]),
    )(x_fold, x_fold, w_pad)


# ------------------------------- reference -----------------------------------
def reference_conv1d(x, filters, stride):
    B, _, L = x.shape
    C, K = filters.shape
    L_out = (L - K) // stride + 1
    idx = (np.arange(L_out) * stride)[:, None] + np.arange(K)[None, :]  # (L_out, K)
    frames = x[:, 0, :][:, idx]                                         # (B, L_out, K)
    return jnp.einsum("btk,ck->bct", frames, filters,
                      precision=jax.lax.Precision.HIGHEST)


if __name__ == "__main__":
    key = jax.random.PRNGKey(0)
    k1, k2 = jax.random.split(key)

    # --- config A: small shapes, multiple time tiles, halo + ragged tail,
    #     small-Q (stacked single-dot) path ---
    C_a, S_a, B_a, L_a = 8, 4, 2, 1024
    filt_a, K_a = build_sinc_filters(C_a, 16)        # even -> bumped to 17
    x_a = jax.random.normal(k1, (B_a, 1, L_a), dtype=jnp.float32)
    out_a = jax.block_until_ready(sinc_conv(x_a, filt_a, S_a, time_tile=128))
    ref_a = reference_conv1d(x_a, filt_a, S_a)
    L_out_a = (L_a - K_a) // S_a + 1
    assert out_a.shape == (B_a, C_a, L_out_a), out_a.shape
    np.testing.assert_allclose(np.asarray(out_a), np.asarray(ref_a),
                               rtol=1e-5, atol=1e-5)

    # --- config B: default (large) tile, B=1 (exercises the v7x two-core
    #     split heuristic), Q=33 (exercises the large-Q accumulate path) ---
    C_b, S_b, B_b, L_b = 16, 4, 1, 4096
    filt_b, K_b = build_sinc_filters(C_b, 128)       # -> kernel_size 129
    x_b = jax.random.normal(k2, (B_b, 1, L_b), dtype=jnp.float32)
    out_b = jax.block_until_ready(sinc_conv(x_b, filt_b, S_b))
    ref_b = reference_conv1d(x_b, filt_b, S_b)
    L_out_b = (L_b - K_b) // S_b + 1
    assert out_b.shape == (B_b, C_b, L_out_b), out_b.shape
    np.testing.assert_allclose(np.asarray(out_b), np.asarray(ref_b),
                               rtol=1e-4, atol=1e-4)    # longer accumulation

    # --- config C: bf16 storage/compute (v6e/v7x input-traffic halving),
    #     f32 MXU accumulation, compared against a bf16-rounded reference ---
    out_c = jax.block_until_ready(
        sinc_conv(x_a, filt_a, S_a, time_tile=128, compute_dtype=jnp.bfloat16))
    ref_c = reference_conv1d(x_a.astype(jnp.bfloat16).astype(jnp.float32),
                             filt_a.astype(jnp.bfloat16).astype(jnp.float32),
                             S_a)
    np.testing.assert_allclose(np.asarray(out_c), np.asarray(ref_c),
                               rtol=2e-2, atol=2e-2)

    print("KERNEL_OK")
</pallas_src>

<mosaic_0001>
module attributes {stable_mosaic.version = 11 : i64} {
  func.func @_sinc_conv_kernel(%arg0: i32, %arg1: i32, %arg2: memref<1x4x128xf32, #tpu.memory_space<vmem>>, %arg3: memref<1x4x128xf32, #tpu.memory_space<vmem>>, %arg4: memref<8x20xf32, #tpu.memory_space<vmem>>, %arg5: memref<1x8x128xf32, #tpu.memory_space<vmem>>, %arg6: memref<4x256xf32, #tpu.memory_space<vmem>>) attributes {dimension_semantics = [#tpu.dimension_semantics<parallel>, #tpu.dimension_semantics<parallel>], iteration_bounds = array<i64: 2, 2>, scalar_prefetch = 0 : i64, scratch_operands = 1 : i64, tpu.core_type = #tpu.core_type<tc>, window_params = [{transform_indices = @transform_0, window_bounds = array<i64: 1, 4, 128>}, {transform_indices = @transform_1, window_bounds = array<i64: 1, 4, 128>}, {pipeline_mode = #tpu.pipeline_mode<synchronous>, transform_indices = @transform_2, window_bounds = array<i64: 8, 20>}, {transform_indices = @transform_3, window_bounds = array<i64: 1, 8, 128>}]} {
    %c0 = arith.constant 0 : index
    %c0_0 = arith.constant 0 : index
    %c0_1 = arith.constant 0 : index
    %0 = vector.load %arg2[%c0, %c0_0, %c0_1] : memref<1x4x128xf32, #tpu.memory_space<vmem>>, vector<1x4x128xf32>
    %1 = vector.shape_cast %0 : vector<1x4x128xf32> to vector<4x128xf32>
    %c0_2 = arith.constant 0 : index
    %c0_3 = arith.constant 0 : index
    %2 = vector.load %arg6[%c0_2, %c0_3] : memref<4x256xf32, #tpu.memory_space<vmem>>, vector<4x128xf32>
    tpu.vector_store %arg6[%c0_2, %c0_3], %1 {strides = array<i32>} : memref<4x256xf32, #tpu.memory_space<vmem>>, vector<4x128xf32>,
    %c0_4 = arith.constant 0 : index
    %c0_5 = arith.constant 0 : index
    %c0_6 = arith.constant 0 : index
    %3 = vector.load %arg3[%c0_4, %c0_5, %c0_6] : memref<1x4x128xf32, #tpu.memory_space<vmem>>, vector<1x4x128xf32>
    %4 = vector.shape_cast %3 : vector<1x4x128xf32> to vector<4x128xf32>
    %c0_7 = arith.constant 0 : index
    %c128 = arith.constant 128 : index
    %5 = vector.load %arg6[%c0_7, %c128] : memref<4x256xf32, #tpu.memory_space<vmem>>, vector<4x128xf32>
    tpu.vector_store %arg6[%c0_7, %c128], %4 {strides = array<i32>} : memref<4x256xf32, #tpu.memory_space<vmem>>, vector<4x128xf32>,
    %c0_8 = arith.constant 0 : index
    %c0_9 = arith.constant 0 : index
    %6 = vector.load %arg6[%c0_8, %c0_9] : memref<4x256xf32, #tpu.memory_space<vmem>>, vector<4x128xf32>
    %c0_10 = arith.constant 0 : index
    %c1 = arith.constant 1 : index
    %7 = vector.load %arg6[%c0_10, %c1] : memref<4x256xf32, #tpu.memory_space<vmem>>, vector<4x128xf32>
    %c0_11 = arith.constant 0 : index
    %c2 = arith.constant 2 : index
    %8 = vector.load %arg6[%c0_11, %c2] : memref<4x256xf32, #tpu.memory_space<vmem>>, vector<4x128xf32>
    %c0_12 = arith.constant 0 : index
    %c3 = arith.constant 3 : index
    %9 = vector.load %arg6[%c0_12, %c3] : memref<4x256xf32, #tpu.memory_space<vmem>>, vector<4x128xf32>
    %c0_13 = arith.constant 0 : index
    %c4 = arith.constant 4 : index
    %10 = vector.load %arg6[%c0_13, %c4] : memref<4x256xf32, #tpu.memory_space<vmem>>, vector<4x128xf32>
    %11 = tpu.concatenate %6, %7, %8, %9, %10 in 0 : vector<4x128xf32>, vector<4x128xf32>, vector<4x128xf32>, vector<4x128xf32>, vector<4x128xf32> -> vector<20x128xf32>
    %c0_14 = arith.constant 0 : index
    %c0_15 = arith.constant 0 : index
    %12 = vector.load %arg4[%c0_14, %c0_15] : memref<8x20xf32, #tpu.memory_space<vmem>>, vector<8x20xf32>
    %cst = arith.constant dense<0.000000e+00> : vector<8x128xf32>
    %13 = tpu.matmul %12, %11, %cst {dimension_numbers = #tpu.dot_dimension_numbers<[1], [0], [0], [1], [0, 0, 1, 1], [], []>} : vector<8x20xf32>, vector<20x128xf32>, vector<8x128xf32> -> vector<8x128xf32>
    %c0_16 = arith.constant 0 : index
    %c0_17 = arith.constant 0 : index
    %c0_18 = arith.constant 0 : index
    %14 = vector.load %arg5[%c0_16, %c0_17, %c0_18] : memref<1x8x128xf32, #tpu.memory_space<vmem>>, vector<1x8x128xf32>
    %15 = vector.shape_cast %14 : vector<1x8x128xf32> to vector<8x128xf32>
    %16 = vector.shape_cast %13 : vector<8x128xf32> to vector<1x8x128xf32>
    tpu.vector_store %arg5[%c0_16, %c0_17, %c0_18], %16 {strides = array<i32>} : memref<1x8x128xf32, #tpu.memory_space<vmem>>, vector<1x8x128xf32>,
    return
  }
  func.func @transform_0(%arg0: i32, %arg1: i32) -> (i32, i32, i32) {
    %c0_i32 = arith.constant 0 : i32
    %c0_i32_0 = arith.constant 0 : i32
    return %arg0, %c0_i32, %arg1 : i32, i32, i32
  }
  func.func @transform_1(%arg0: i32, %arg1: i32) -> (i32, i32, i32) {
    %c1_i32 = arith.constant 1 : i32
    %0 = arith.addi %arg1, %c1_i32 : i32
    %c1_i32_0 = arith.constant 1 : i32
    %1 = arith.muli %0, %c1_i32_0 : i32
    %c0_i32 = arith.constant 0 : i32
    %c0_i32_1 = arith.constant 0 : i32
    return %arg0, %c0_i32, %1 : i32, i32, i32
  }
  func.func @transform_2(%arg0: i32, %arg1: i32) -> (i32, i32) {
    %c0_i32 = arith.constant 0 : i32
    %c0_i32_0 = arith.constant 0 : i32
    %c0_i32_1 = arith.constant 0 : i32
    return %c0_i32, %c0_i32_0 : i32, i32
  }
  func.func @transform_3(%arg0: i32, %arg1: i32) -> (i32, i32, i32) {
    %c0_i32 = arith.constant 0 : i32
    %c0_i32_0 = arith.constant 0 : i32
    return %arg0, %c0_i32, %arg1 : i32, i32, i32
  }
}

</mosaic_0001>

<llo_original>
// kernel: tpu_custom_call.1
$region0: #{tpu_custom_call.1}
  #allocation0 [shape = 'u32[]', space=smem, size = 0x4, offset = 0x4, fixed_abs, tag = 'smem constant byte address 0x4 - core index']
  #allocation1 [shape = 'u32[144,128]{1,0:T(1,128)}', space=vmem, size = 0x12000, scoped, tag = 'internal scratch']
  #allocation2 [shape = 'f32[4,256]{1,0:T(4,128)}', space=vmem, size = 0x1000, scoped, tag = 'scratch operand']
  %s0 = inlined_call_operand.hbm [shape: f32[2,4,384], index: 0, kind: input, shape index: {}]
  %s1 = inlined_call_operand.hbm [shape: f32[2,4,384], index: 1, kind: input, shape index: {}]
  %s2 = inlined_call_operand.hbm [shape: f32[8,20], index: 2, kind: input, shape index: {}]
  %s3 = inlined_call_operand.hbm [shape: f32[2,8,252], index: 3, kind: output, shape index: {}]
  %s4 = sld [smem:[#allocation0]]
  $region57: #{tpu_custom_call.1} parent=0
    _
  %s6 = ssub.s32 1, %s4
  %s7 = scalar_select 0, %s6, %s4
  $region1: #{tpu_custom_call.1} parent=0
    #allocation3 [shape = 'u8[4096]{0}', space=vmem, size = 0x1000, scoped, tag = 'input window, operand 0']
    #allocation4 [shape = 's32[2]{0}', space=sflag, size = 0x8, scoped, tag = 'scoped memory for tpu_custom_call.1']
    #allocation5 [shape = 's32[2]{0}', space=sflag, size = 0x8, scoped, tag = 'scoped memory for tpu_custom_call.1']
    #allocation6 [shape = 'u8[4096]{0}', space=vmem, size = 0x1000, scoped, tag = 'input window, operand 1']
    #allocation7 [shape = 's32[2]{0}', space=sflag, size = 0x8, scoped, tag = 'scoped memory for tpu_custom_call.1']
    #allocation8 [shape = 'u8[4096]{0}', space=vmem, size = 0x1000, scoped, tag = 'input window, operand 2, single buffered']
    #allocation9 [shape = 'u8[8192]{0}', space=vmem, size = 0x2000, scoped, tag = 'output window, operand 0']
    %8 = vsyncpa [#allocation4], 0
    %s9 = scalar_lea.sflag [#allocation4], 1
    %10 = vsyncpa %s9, 0
    %11 = vsyncpa [#allocation7], 0
    %s12 = scalar_lea.sflag [#allocation7], 1
    %13 = vsyncpa %s12, 0
    %14 = vsyncpa [#allocation5], 0
    %s15 = scalar_lea.sflag [#allocation5], 1
    %16 = vsyncpa %s15, 0
    loop: start=0, step=1, limit=6
    $region2: #{tpu_custom_call.1} parent=1 // loop_pre_header
      _
    $region3: #{tpu_custom_call.1} parent=1 // loop_header
      %s18 = sphi 0, %s22
      %p19 = scmp.ge.s32.totalorder %s18, 6
      %s25 = sphi 0, %s37
      %s26 = sphi 0, %s33
      %s27 = sphi 0, %s25
      %s28 = sphi 0, %s26
      %s29 = sphi 0, %s27
      %s30 = sphi 0, %s28
      %s42 = sphi 0, %s44
      %s45 = sphi 0, %s42
      %s46 = sphi 0, %s45
      %s62 = sphi 0, %s46
      %s72 = sphi 0, %s74
      %s75 = sphi 0, %s72
      %s76 = sphi 0, %s75
      %s92 = sphi 0, %s76
      %s96 = sphi 0, %s96
      %s98 = sphi 0, %s96
      %s99 = sphi 0, %s98
      %s113 = sphi 0, %s99
      %s121 = sphi 0, %s123
      %s124 = sphi 0, %s121
      %s125 = sphi 0, %s124
      %s141 = sphi 0, %s125
    $region4: #{tpu_custom_call.1} parent=1 // loop_header_branch
      %21 = sbr.rel (%p19) target = $region8
    $region5: #{tpu_custom_call.1} parent=1 // loop_body
      %s23 = ssub.s32 %s18, 1
      %s24 = ssub.s32 %s18, 2
      %s31 = sadd.s32 1, %s26
      %p32 = scmp.ge.s32.totalorder %s31, 2
      %s33 = scalar_select %p32, 0, %s31
      %s34 = sadd.s32 1, %s25
      %s35 = scalar_select %p32, %s34, %s25
      %p36 = scmp.ge.s32.totalorder %s35, 2
      %s37 = scalar_select %p36, 0, %s35
      %s38 = ssub.s32 %s25, %s37
      %s39 = ssub.s32 %s26, %s33
      %s40 = sor.u32 %s38, %s39
      %p41 = scmp.eq.s32.totalorder %s40, 0
      %s43 = sadd.s32 %s42, 1
      %s44 = scalar_select %p41, %s42, %s43
      %p47 = pneg %p41
      %p48 = scmp.eq.s32.totalorder %s18, 3
      %p49 = por %p47, %p48
      %p50 = scmp.ne.s32.totalorder %s42, %s45
      %p51 = scmp.eq.s32.totalorder %s18, 0
      %p52 = por %p50, %p51
      %p53 = scmp.ne.s32.totalorder %s42, %s45
      %p54 = scmp.eq.s32.totalorder %s23, 3
      %p55 = por %p53, %p54
      %p56 = scmp.ne.s32.totalorder %s45, %s46
      %p57 = scmp.eq.s32.totalorder %s23, 0
      %p58 = por %p56, %p57
      %p59 = scmp.ne.s32.totalorder %s45, %s46
      %p60 = scmp.eq.s32.totalorder %s24, 3
      %p61 = por %p59, %p60
      %p63 = scmp.ne.s32.totalorder %s46, %s62
      %p64 = scmp.eq.s32.totalorder %s24, 0
      %p65 = por %p63, %p64
      %s66 = sadd.s32 %s26, 1
      %s67 = sadd.s32 %s33, 1
      %s68 = ssub.s32 %s25, %s37
      %s69 = ssub.s32 %s66, %s67
      %s70 = sor.u32 %s68, %s69
      %p71 = scmp.eq.s32.totalorder %s70, 0
      %s73 = sadd.s32 %s72, 1
      %s74 = scalar_select %p71, %s72, %s73
      %p77 = pneg %p71
      %p78 = scmp.eq.s32.totalorder %s18, 3
      %p79 = por %p77, %p78
      %p80 = scmp.ne.s32.totalorder %s72, %s75
      %p81 = scmp.eq.s32.totalorder %s18, 0
      %p82 = por %p80, %p81
      %p83 = scmp.ne.s32.totalorder %s72, %s75
      %p84 = scmp.eq.s32.totalorder %s23, 3
      %p85 = por %p83, %p84
      %p86 = scmp.ne.s32.totalorder %s75, %s76
      %p87 = scmp.eq.s32.totalorder %s23, 0
      %p88 = por %p86, %p87
      %p89 = scmp.ne.s32.totalorder %s75, %s76
      %p90 = scmp.eq.s32.totalorder %s24, 3
      %p91 = por %p89, %p90
      %p93 = scmp.ne.s32.totalorder %s76, %s92
      %p94 = scmp.eq.s32.totalorder %s24, 0
      %p95 = por %p93, %p94
      %s97 = sadd.s32 %s96, 1
      %p100 = scmp.eq.s32.totalorder %s18, 3
      %p101 = scmp.ne.s32.totalorder %s96, %s98
      %p102 = scmp.eq.s32.totalorder %s18, 0
      %p103 = por %p101, %p102
      %p104 = scmp.ne.s32.totalorder %s96, %s98
      %p105 = scmp.eq.s32.totalorder %s23, 3
      %p106 = por %p104, %p105
      %p107 = scmp.ne.s32.totalorder %s98, %s99
      %p108 = scmp.eq.s32.totalorder %s23, 0
      %p109 = por %p107, %p108
      %p110 = scmp.ne.s32.totalorder %s98, %s99
      %p111 = scmp.eq.s32.totalorder %s24, 3
      %p112 = por %p110, %p111
      %p114 = scmp.ne.s32.totalorder %s99, %s113
      %p115 = scmp.eq.s32.totalorder %s24, 0
      %p116 = por %p114, %p115
      %s117 = ssub.s32 %s25, %s37
      %s118 = ssub.s32 %s26, %s33
      %s119 = sor.u32 %s117, %s118
      %p120 = scmp.eq.s32.totalorder %s119, 0
      %s122 = sadd.s32 %s121, 1
      %s123 = scalar_select %p120, %s121, %s122
      %p126 = pneg %p120
      %p127 = scmp.eq.s32.totalorder %s18, 3
      %p128 = por %p126, %p127
      %p129 = scmp.ne.s32.totalorder %s121, %s124
      %p130 = scmp.eq.s32.totalorder %s18, 0
      %p131 = por %p129, %p130
      %p132 = scmp.ne.s32.totalorder %s121, %s124
      %p133 = scmp.eq.s32.totalorder %s23, 3
      %p134 = por %p132, %p133
      %p135 = scmp.ne.s32.totalorder %s124, %s125
      %p136 = scmp.eq.s32.totalorder %s23, 0
      %p137 = por %p135, %p136
      %p138 = scmp.ne.s32.totalorder %s124, %s125
      %p139 = scmp.eq.s32.totalorder %s24, 3
      %p140 = por %p138, %p139
      %p142 = scmp.ne.s32.totalorder %s125, %s141
      %p143 = scmp.eq.s32.totalorder %s24, 0
      %p144 = por %p142, %p143
      %p145 = scmp.le.s32.totalorder 1, %s18
      %p146 = scmp.lt.s32.totalorder %s18, 5
      %p147 = pnand %p145, %p146
      %p148 = pneg %p147
      // Predicated region
      $region9: #{tpu_custom_call.1} parent=5 // pred_check
        _
      $region10: #{tpu_custom_call.1} parent=5 // pred_check_branch
        %150 = sbr.rel (%p147) target = $region12
      $region11: #{tpu_custom_call.1} parent=5 // pred_region
        %s151 = ssub.s32 %s18, 1
        // Predicated region
        $region13: #{tpu_custom_call.1} parent=11 // pred_check
          %p152 = pneg %p109
        $region14: #{tpu_custom_call.1} parent=11 // pred_check_branch
          %154 = sbr.rel (%p152) target = $region16
        $region15: #{tpu_custom_call.1} parent=11 // pred_region
          %s156 = ssub.s32 128, 128
          %157 = vsyncadd [#allocation7], %s156
          %s159 = sshll.u32 [#allocation8], 4
          %s160 = int_to_ptr.vmem [resolvable:$true] %s159
          %162 = dma.hbm_to_vmem [thread:$0]  %s2, 128, %s160, [#allocation7]
        $region16: #{tpu_custom_call.1} parent=11 // pred_fallthru
          _
      $region12: #{tpu_custom_call.1} parent=5 // pred_fallthru
        _
      %p163 = scmp.lt.s32.totalorder %s18, 4
      // Predicated region
      $region17: #{tpu_custom_call.1} parent=5 // pred_check
        %p164 = pneg %p163
      $region18: #{tpu_custom_call.1} parent=5 // pred_check_branch
        %166 = sbr.rel (%p164) target = $region20
      $region19: #{tpu_custom_call.1} parent=5 // pred_region
        // Predicated region
        $region21: #{tpu_custom_call.1} parent=19 // pred_check
          %p167 = pneg %p52
        $region22: #{tpu_custom_call.1} parent=19 // pred_check_branch
          %169 = sbr.rel (%p167) target = $region24
        $region23: #{tpu_custom_call.1} parent=19 // pred_region
          %s170 = sand.u32 %s42, 1
          %s171 = scalar_lea.sflag [#allocation4], %s170
          %s172 = sand.u32 %s42, 1
          %s173 = smul.addr %s172, 4
          %s174 = scalar_lea.vmem [#allocation3], %s173
          %s176 = ssub.s32 64, 64
          %177 = vsyncadd %s171, %s176
          %s178 = smul.addr %s25, 3
          %s179 = sadd.s32 %s26, %s178
          %s180 = smul.addr %s179, 64
          %s181 = scalar_lea.hbm %s0, %s180
          %s183 = sshll.u32 %s174, 4
          %s184 = int_to_ptr.vmem [resolvable:$true] %s183
          %186 = dma.hbm_to_vmem [thread:$0]  %s181, 64, %s184, %s171
        $region24: #{tpu_custom_call.1} parent=19 // pred_fallthru
          _
        // Predicated region
        $region25: #{tpu_custom_call.1} parent=19 // pred_check
          %p187 = pneg %p82
        $region26: #{tpu_custom_call.1} parent=19 // pred_check_branch
          %189 = sbr.rel (%p187) target = $region28
        $region27: #{tpu_custom_call.1} parent=19 // pred_region
          %s190 = sand.u32 %s18, 1
          %s191 = scalar_lea.sflag [#allocation7], %s190
          %s192 = sand.u32 %s72, 1
          %s193 = smul.addr %s192, 4
          %s194 = scalar_lea.vmem [#allocation6], %s193
          %s195 = sadd.s32 %s26, 1
          %s197 = ssub.s32 64, 64
          %198 = vsyncadd %s191, %s197
          %s199 = smul.addr %s25, 3
          %s200 = sadd.s32 %s195, %s199
          %s201 = smul.addr %s200, 64
          %s202 = scalar_lea.hbm %s1, %s201
          %s204 = sshll.u32 %s194, 4
          %s205 = int_to_ptr.vmem [resolvable:$true] %s204
          %207 = dma.hbm_to_vmem [thread:$0]  %s202, 64, %s205, %s191
        $region28: #{tpu_custom_call.1} parent=19 // pred_fallthru
          _
      $region20: #{tpu_custom_call.1} parent=5 // pred_fallthru
        _
      %p208 = scmp.le.s32.totalorder 1, %s18
      %p209 = scmp.lt.s32.totalorder %s18, 5
      %p210 = pnand %p208, %p209
      %p211 = pneg %p210
      // Predicated region
      $region29: #{tpu_custom_call.1} parent=5 // pred_check
        _
      $region30: #{tpu_custom_call.1} parent=5 // pred_check_branch
        %213 = sbr.rel (%p210) target = $region32
      $region31: #{tpu_custom_call.1} parent=5 // pred_region
        %s214 = ssub.s32 %s18, 1
        %s215 = sand.u32 %s45, 1
        %s216 = scalar_lea.sflag [#allocation4], %s215
        %s217 = sand.u32 %s45, 1
        %s218 = smul.addr %s217, 4
        %s219 = scalar_lea.vmem [#allocation3], %s218
        // Predicated region
        $region33: #{tpu_custom_call.1} parent=31 // pred_check
          %p220 = pneg %p58
        $region34: #{tpu_custom_call.1} parent=31 // pred_check_branch
          %222 = sbr.rel (%p220) target = $region36
        $region35: #{tpu_custom_call.1} parent=31 // pred_region
          %223 = dma.done %s216, 64
        $region36: #{tpu_custom_call.1} parent=31 // pred_fallthru
          _
        %s224 = sand.u32 %s23, 1
        %s225 = scalar_lea.sflag [#allocation7], %s224
        %s226 = sand.u32 %s75, 1
        %s227 = smul.addr %s226, 4
        %s228 = scalar_lea.vmem [#allocation6], %s227
        // Predicated region
        $region37: #{tpu_custom_call.1} parent=31 // pred_check
          %p229 = pneg %p88
        $region38: #{tpu_custom_call.1} parent=31 // pred_check_branch
          %231 = sbr.rel (%p229) target = $region40
        $region39: #{tpu_custom_call.1} parent=31 // pred_region
          %232 = dma.done %s225, 64
        $region40: #{tpu_custom_call.1} parent=31 // pred_fallthru
          _
        // Predicated region
        $region41: #{tpu_custom_call.1} parent=31 // pred_check
          %p233 = pneg %p109
        $region42: #{tpu_custom_call.1} parent=31 // pred_check_branch
          %235 = sbr.rel (%p233) target = $region44
        $region43: #{tpu_custom_call.1} parent=31 // pred_region
          %236 = dma.done [#allocation7], 128
        $region44: #{tpu_custom_call.1} parent=31 // pred_fallthru
          _
        %s237 = sand.u32 %s45, 1
        %s238 = scalar_lea.sflag [#allocation4], %s237
        %s239 = sand.u32 %s45, 1
        %s240 = smul.addr %s239, 4
        %s241 = scalar_lea.vmem [#allocation3], %s240
        %p242 = pneg %p58
        %p243 = pneg %p55
        %s244 = sand.u32 %s23, 1
        %s245 = scalar_lea.sflag [#allocation7], %s244
        %s246 = sand.u32 %s75, 1
        %s247 = smul.addr %s246, 4
        %s248 = scalar_lea.vmem [#allocation6], %s247
        %p249 = pneg %p88
        %p250 = pneg %p85
        %p251 = pneg %p109
        %p252 = pneg %p106
        %p253 = pneg %p137
        %p254 = pneg %p134
        %s255 = sand.u32 %s124, 1
        %s256 = scalar_lea.sflag [#allocation5], %s255
        %s257 = sand.u32 %s124, 1
        %s258 = smul.addr %s257, 8
        %s259 = scalar_lea.vmem [#allocation9], %s258
        %s260 = sadd.s32 %s28, 1
        %v261 = vld [vmem:[%s219] sm:$0xf]
        %262 = vst [vmem:[#allocation2] sm:$0xf] %v261
        %v263 = vld [vmem:[%s228] sm:$0xf]
        %264 = vst [vmem:[#allocation2 + $0x4] sm:$0xf] %v263
        %v265 = vld [vmem:[#allocation2] sm:$0xf]
        %v266 = vld [vmem:[#allocation2] sm:$0xff]
        %v268 = vcombine.low %v266, %v266
        %269 = vrot.lane.b32.xlu0 %v268, 127
        %v270 = vpop.permute.xlu0 %269
        %271 = vrot.lane.b32.xlu0 %v266, 127
        %v272 = vpop.permute.xlu0 %271
        %vm273 = vcmask 1039360
        %v274 = vsel %vm273, %v270, %v272
        %v276 = vcombine.high %v266, %v266
        %277 = vrot.lane.b32.xlu0 %v266, 126
        %v278 = vpop.permute.xlu0 %277
        %279 = vrot.lane.b32.xlu0 %v276, 126
        %v280 = vpop.permute.xlu0 %279
        %vm281 = vcmask 1031168
        %v282 = vsel %vm281, %v278, %v280
        %284 = vrot.lane.b32.xlu0 %v268, 125
        %v285 = vpop.permute.xlu0 %284
        %286 = vrot.lane.b32.xlu0 %v266, 125
        %v287 = vpop.permute.xlu0 %286
        %vm288 = vcmask 1022976
        %v289 = vsel %vm288, %v285, %v287
        %291 = vrot.lane.b32.xlu0 %v266, 124
        %v292 = vpop.permute.xlu0 %291
        %293 = vrot.lane.b32.xlu0 %v276, 124
        %v294 = vpop.permute.xlu0 %293
        %vm295 = vcmask 1014784
        %v296 = vsel %vm295, %v292, %v294
        %vm297 = vcmask 1043456
        %v298 = vsel %vm297, %v265, %v274
        %v299 = vsel %vm297, %v282, %v289
        %v300 = vld [vmem:[#allocation8] sm:$0xff]
        %vm301 = vcmask 162816
        %v303 = vsel %vm301, %v300, 0
        %v305 = vsel %vm297, %v296, 0
        %307 = vmatprep.subr.mxu0 0.0
        %308 = vmatpush1.msra.mxu0 0.0
        %309 = vmatprep.subr.mxu0 0.0
        %310 = vmatpush1.msra.mxu0 0.0
        %311 = vmatprep.subr.mxu0 0.0
        %312 = vmatpush1.msra.mxu0 0.0
        %313 = vmatprep.subr.mxu0 0.0
        %314 = vmatpush1.msra.mxu0 0.0
        %315 = vmatprep.subr.mxu0 0.0
        %316 = vmatpush1.msra.mxu0 0.0
        %317 = vmatprep.subr.mxu0 0.0
        %318 = vmatpush1.msra.mxu0 0.0
        %319 = vmatprep.subr.mxu0 0.0
        %320 = vmatpush1.msra.mxu0 0.0
        %321 = vmatprep.subr.mxu0 0.0
        %322 = vmatpush1.msra.mxu0 0.0
        %323 = vmatprep.subr.mxu0 0.0
        %324 = vmatpush1.msra.mxu0 0.0
        %325 = vmatprep.subr.mxu0 0.0
        %326 = vmatpush1.msra.mxu0 0.0
        %327 = vmatprep.subr.mxu0 0.0
        %328 = vmatpush1.msra.mxu0 0.0
        %329 = vmatprep.subr.mxu0 0.0
        %330 = vmatpush1.msra.mxu0 0.0
        %331 = vmatprep.subr.mxu0 0.0
        %332 = vmatpush1.msra.mxu0 0.0
        %333 = vmatprep.subr.mxu0 0.0
        %334 = vmatpush1.msra.mxu0 %v305
        %335 = vmatprep.subr.mxu0 0.0
        %336 = vmatpush1.msra.mxu0 %v299
        %337 = vmatprep.subr.mxu0 0.0
        %338 = vmatpush1.msra.mxu0 %v298
        %339 = vmatprep.subr.mxu0 0.0
        %340 = vmatpush2.msra.mxu0 0.0
        %341 = vmatprep.subr.mxu0 0.0
        %342 = vmatpush2.msra.mxu0 0.0
        %343 = vmatprep.subr.mxu0 0.0
        %344 = vmatpush2.msra.mxu0 0.0
        %345 = vmatprep.subr.mxu0 0.0
        %346 = vmatpush2.msra.mxu0 0.0
        %347 = vmatprep.subr.mxu0 0.0
        %348 = vmatpush2.msra.mxu0 0.0
        %349 = vmatprep.subr.mxu0 0.0
        %350 = vmatpush2.msra.mxu0 0.0
        %351 = vmatprep.subr.mxu0 0.0
        %352 = vmatpush2.msra.mxu0 0.0
        %353 = vmatprep.subr.mxu0 0.0
        %354 = vmatpush2.msra.mxu0 0.0
        %355 = vmatprep.subr.mxu0 0.0
        %356 = vmatpush2.msra.mxu0 0.0
        %357 = vmatprep.subr.mxu0 0.0
        %358 = vmatpush2.msra.mxu0 0.0
        %359 = vmatprep.subr.mxu0 0.0
        %360 = vmatpush2.msra.mxu0 0.0
        %361 = vmatprep.subr.mxu0 0.0
        %362 = vmatpush2.msra.mxu0 0.0
        %363 = vmatprep.subr.mxu0 0.0
        %364 = vmatpush2.msra.mxu0 0.0
        %365 = vmatprep.subr.mxu0 0.0
        %366 = vmatpush2.msra.mxu0 0.0
        %367 = vmatprep.subr.mxu0 0.0
        %368 = vmatpush2.msra.mxu0 0.0
        %369 = vmatprep.subr.mxu0 0.0
        %370 = vmatpush2.msra.mxu0 0.0
        %371 = vmatprep.mubr.f32.mxu0 0.0
        %372 = vmatmul.mubr.f32.gmra.mxu0 %v303
        %v373 = vpop.f32.mrf.mxu0
        %v374 = vadd.f32 0.0, %v373
        %v375 = vpop.f32.mrf.mxu0
        %376 = vdwg.mxu0
        %377 = vst [vmem:[%s259] sm:$0xff] %v374
        %s378 = sand.u32 %s124, 1
        %s379 = scalar_lea.sflag [#allocation5], %s378
        %s380 = sand.u32 %s124, 1
        %s381 = smul.addr %s380, 8
        %s382 = scalar_lea.vmem [#allocation9], %s381
        // Predicated region
        $region45: #{tpu_custom_call.1} parent=31 // pred_check
          %p383 = pneg %p134
        $region46: #{tpu_custom_call.1} parent=31 // pred_check_branch
          %385 = sbr.rel (%p383) target = $region48
        $region47: #{tpu_custom_call.1} parent=31 // pred_region
          %s387 = ssub.s32 128, 128
          %388 = vsyncadd %s379, %s387
          %s389 = smul.addr %s27, 2
          %s390 = sadd.s32 %s28, %s389
          %s391 = smul.addr %s390, 128
          %s392 = scalar_lea.hbm %s3, %s391
          %s394 = sshll.u32 %s382, 4
          %s395 = int_to_ptr.vmem [resolvable:$true] %s394
          %397 = dma.vmem_to_hbm [thread:$0]  %s395, 128, %s392, %s379
        $region48: #{tpu_custom_call.1} parent=31 // pred_fallthru
          _
      $region32: #{tpu_custom_call.1} parent=5 // pred_fallthru
        _
      %p398 = scmp.le.s32.totalorder 2, %s18
      // Predicated region
      $region49: #{tpu_custom_call.1} parent=5 // pred_check
        %p399 = pneg %p398
      $region50: #{tpu_custom_call.1} parent=5 // pred_check_branch
        %401 = sbr.rel (%p399) target = $region52
      $region51: #{tpu_custom_call.1} parent=5 // pred_region
        %s402 = ssub.s32 %s18, 2
        // Predicated region
        $region53: #{tpu_custom_call.1} parent=51 // pred_check
          %p403 = pneg %p140
        $region54: #{tpu_custom_call.1} parent=51 // pred_check_branch
          %405 = sbr.rel (%p403) target = $region56
        $region55: #{tpu_custom_call.1} parent=51 // pred_region
          %s406 = sand.u32 %s125, 1
          %s407 = scalar_lea.sflag [#allocation5], %s406
          %s408 = sand.u32 %s125, 1
          %s409 = smul.addr %s408, 8
          %s410 = scalar_lea.vmem [#allocation9], %s409
          %411 = dma.done %s407, 128
        $region56: #{tpu_custom_call.1} parent=51 // pred_fallthru
          _
      $region52: #{tpu_custom_call.1} parent=5 // pred_fallthru
        _
    $region6: #{tpu_custom_call.1} parent=1 // loop_footer
      %s22 = sadd.s32 1, %s18
    $region7: #{tpu_custom_call.1} parent=1 // loop_footer_branch
      %17 = sbr.rel target = $region3
    $region8: #{tpu_custom_call.1} parent=1 // loop_exit
      _
    %412 = vsyncpa [#allocation4], 1
    %s413 = scalar_lea.sflag [#allocation4], 1
    %414 = vsyncpa %s413, 1
    %415 = vsyncpa [#allocation7], 1
    %s416 = scalar_lea.sflag [#allocation7], 1
    %417 = vsyncpa %s416, 1
    %418 = vsyncpa [#allocation5], 1
    %s419 = scalar_lea.sflag [#allocation5], 1
    %420 = vsyncpa %s419, 1

</llo_original>
